<compile_context>
chip_gen: v6e
topology: v6e:2x2x1
jax: 0.10.0
libtpu: 0.0.40
codegen_flags: <defaults>
</compile_context>

<pallas_src>
from functools import partial  # noqa: F401  (kept for API parity; not needed after rewrite)

import jax
import jax.numpy as jnp
from jax import lax
from jax.experimental import pallas as pl
from jax.experimental.pallas import tpu as pltpu


def _noise_linear_kernel(noise_ref, x_ref, w_ref, b_ref, z_ref, o_ref,
                         base_acc, var_acc):
    """Tiled (M, N, K) kernel: base matmul + variance matmul, fused finalize.

    noise_ref: SMEM (1,) f32   -- noise level (runtime scalar, no recompile per level)
    x_ref:     VMEM (TM, TK)
    w_ref:     VMEM (TN, TK)   -- PyTorch nn.Linear weight layout (OUT, IN) tile
    b_ref:     VMEM (1,  TN)
    z_ref:     VMEM (TM, TN)   -- standard-normal draw, one per output element
    o_ref:     VMEM (TM, TN)
    base_acc:  VMEM (TM, TN) f32 scratch  (x @ W^T accumulator)
    var_acc:   VMEM (TM, TN) f32 scratch  ((x*x) @ (W*W)^T accumulator)
    """
    k = pl.program_id(2)

    @pl.when(k == 0)
    def _():
        base_acc[...] = jnp.zeros_like(base_acc)
        var_acc[...] = jnp.zeros_like(var_acc)

    x = x_ref[...]                     # native dtype, MXU-friendly
    w = w_ref[...]

    # Base linear term: x @ W^T (contract over IN), f32 accumulation.
    base_acc[...] += lax.dot_general(
        x, w,
        dimension_numbers=(((1,), (1,)), ((), ())),
        preferred_element_type=jnp.float32,
    )

    # Variance of the per-row weight-noise term: (x*x) @ (W*W)^T.
    var_acc[...] += lax.dot_general(
        x * x, w * w,
        dimension_numbers=(((1,), (1,)), ((), ())),
        preferred_element_type=jnp.float32,
    )

    @pl.when(k == pl.num_programs(2) - 1)
    def _():
        noise = noise_ref[0]
        b = b_ref[...].astype(jnp.float32)          # (1, TN)  broadcasts over rows
        z = z_ref[...].astype(jnp.float32)          # (TM, TN)
        noisy = noise * z * jnp.sqrt(var_acc[...])
        o_ref[...] = (base_acc[...] + b + noisy).astype(o_ref.dtype)


def _round_up(v, m):
    return (v + m - 1) // m * m


def _noise_linear_pallas(x, weight, bias, z, noise):
    """Pad to lane-dense tiles, run the tiled kernel, slice the result."""
    B, IN = x.shape
    OUT = weight.shape[0]

    # Lane-dense, VMEM-friendly tiles (small enough for v7x's 64 MiB VMEM,
    # TN a multiple of 128 so output stores are unmasked vst).
    TM = min(128, _round_up(B, 8))
    TN = min(256, _round_up(OUT, 128))
    TK = min(512, _round_up(IN, 128))

    B_p = _round_up(B, TM)
    OUT_p = _round_up(OUT, TN)
    IN_p = _round_up(IN, TK)

    x_p = jnp.pad(x, ((0, B_p - B), (0, IN_p - IN)))
    w_p = jnp.pad(weight, ((0, OUT_p - OUT), (0, IN_p - IN)))
    b_p = jnp.pad(bias.reshape(1, OUT), ((0, 0), (0, OUT_p - OUT)))
    z_p = jnp.pad(z.astype(jnp.float32), ((0, B_p - B), (0, OUT_p - OUT)))
    noise_arr = jnp.asarray([noise], dtype=jnp.float32)

    grid = (B_p // TM, OUT_p // TN, IN_p // TK)

    out = pl.pallas_call(
        _noise_linear_kernel,
        out_shape=jax.ShapeDtypeStruct((B_p, OUT_p), x.dtype),
        grid=grid,
        in_specs=[
            pl.BlockSpec(memory_space=pltpu.MemorySpace.SMEM),      # noise scalar
            pl.BlockSpec((TM, TK), lambda i, j, k: (i, k)),         # x tile
            pl.BlockSpec((TN, TK), lambda i, j, k: (j, k)),         # W tile
            pl.BlockSpec((1, TN), lambda i, j, k: (0, j)),          # bias tile
            pl.BlockSpec((TM, TN), lambda i, j, k: (i, j)),         # z tile
        ],
        out_specs=pl.BlockSpec((TM, TN), lambda i, j, k: (i, j)),
        scratch_shapes=[
            pltpu.VMEM((TM, TN), jnp.float32),   # base accumulator
            pltpu.VMEM((TM, TN), jnp.float32),   # variance accumulator
        ],
        compiler_params=pltpu.CompilerParams(
            dimension_semantics=("parallel", "parallel", "arbitrary")),
    )(noise_arr, x_p, w_p, b_p, z_p)

    return out[:B, :OUT]


def noise_linear_forward(x, weight, bias, noise, key=None):
    """JAX wrapper reproducing NoiseLinear.forward.

    x: (batch, in_features); weight: (out_features, in_features); bias: (out_features,).
    """
    # TODO(synk): if `noise` is a traced value, call the kernel unconditionally
    # (noise==0 inside the kernel reduces exactly to a plain linear).
    if not noise:
        return x @ weight.T + bias

    if key is None:
        key = jax.random.PRNGKey(0)
    z = jax.random.normal(key, (x.shape[0], weight.shape[0]), dtype=jnp.float32)
    return _noise_linear_pallas(x, weight, bias, z, float(noise))


if __name__ == "__main__":
    # Small, module-consistent shapes: x is (batch, in_features).
    batch, in_features, out_features = 4, 32, 16
    noise_level = 0.1

    root = jax.random.PRNGKey(0)
    kx, kw, kb, kz = jax.random.split(root, 4)

    x = jax.random.normal(kx, (batch, in_features), dtype=jnp.float32)
    # Deterministic nn.Linear-style init: U(-1/sqrt(in), 1/sqrt(in)).
    bound = 1.0 / (in_features ** 0.5)
    weight = jax.random.uniform(kw, (out_features, in_features), jnp.float32, -bound, bound)
    bias = jax.random.uniform(kb, (out_features,), jnp.float32, -bound, bound)

    # Noisy forward through the Pallas kernel.
    y = noise_linear_forward(x, weight, bias, noise_level, key=kz)
    y = jax.block_until_ready(y)
    assert y.shape == (batch, out_features)
    assert bool(jnp.all(jnp.isfinite(y)))

    # Reference using the same z draw the wrapper used (key=kz).
    z = jax.random.normal(kz, (batch, out_features), dtype=jnp.float32)
    base_ref = jnp.dot(x, weight.T, precision="highest") + bias
    var_ref = jnp.dot(x * x, (weight * weight).T, precision="highest")
    ref_noisy = base_ref + noise_level * z * jnp.sqrt(var_ref)
    assert bool(jnp.allclose(y, ref_noisy, atol=1e-3, rtol=1e-3))

    # Noise-free pass through the SAME kernel must match a plain linear.
    y0 = _noise_linear_pallas(
        x, weight, bias, jnp.zeros((batch, out_features), jnp.float32), 0.0)
    y0 = jax.block_until_ready(y0)
    assert bool(jnp.allclose(y0, base_ref, atol=1e-3, rtol=1e-3))

    # noise == 0 Python shortcut (matches the module's `if not self.noise:` branch).
    y_clean = noise_linear_forward(x, weight, bias, 0)
    assert bool(jnp.allclose(y_clean, x @ weight.T + bias, atol=1e-5))

    print("KERNEL_OK")
</pallas_src>

<mosaic_0001>
module attributes {stable_mosaic.version = 11 : i64} {
  func.func @_noise_linear_kernel(%arg0: i32, %arg1: i32, %arg2: i32, %arg3: memref<1xf32, #tpu.memory_space<smem>>, %arg4: memref<8x128xf32, #tpu.memory_space<vmem>>, %arg5: memref<128x128xf32, #tpu.memory_space<vmem>>, %arg6: memref<1x128xf32, #tpu.memory_space<vmem>>, %arg7: memref<8x128xf32, #tpu.memory_space<vmem>>, %arg8: memref<8x128xf32, #tpu.memory_space<vmem>>, %arg9: memref<8x128xf32, #tpu.memory_space<vmem>>, %arg10: memref<8x128xf32, #tpu.memory_space<vmem>>) attributes {dimension_semantics = [#tpu.dimension_semantics<parallel>, #tpu.dimension_semantics<parallel>, #tpu.dimension_semantics<arbitrary>], iteration_bounds = array<i64: 1, 1, 1>, scalar_prefetch = 0 : i64, scratch_operands = 2 : i64, tpu.core_type = #tpu.core_type<tc>, window_params = [{transform_indices = @transform_0, window_bounds = array<i64: 1>}, {transform_indices = @transform_1, window_bounds = array<i64: 8, 128>}, {transform_indices = @transform_2, window_bounds = array<i64: 128, 128>}, {transform_indices = @transform_3, window_bounds = array<i64: 1, 128>}, {transform_indices = @transform_4, window_bounds = array<i64: 8, 128>}, {transform_indices = @transform_5, window_bounds = array<i64: 8, 128>}]} {
    %c0_i32 = arith.constant 0 : i32
    %0 = arith.cmpi eq, %arg2, %c0_i32 : i32
    %1 = arith.extui %0 : i1 to i32
    %c0_i32_0 = arith.constant 0 : i32
    %2 = arith.cmpi ne, %1, %c0_i32_0 : i32
    scf.if %2 {
      %cst_15 = arith.constant 0.000000e+00 : f32
      %18 = vector.broadcast %cst_15 : f32 to vector<8x128xf32>
      %c0_16 = arith.constant 0 : index
      %c0_17 = arith.constant 0 : index
      %19 = vector.load %arg9[%c0_16, %c0_17] : memref<8x128xf32, #tpu.memory_space<vmem>>, vector<8x128xf32>
      tpu.vector_store %arg9[%c0_16, %c0_17], %18 {strides = array<i32>} : memref<8x128xf32, #tpu.memory_space<vmem>>, vector<8x128xf32>,
      %cst_18 = arith.constant 0.000000e+00 : f32
      %20 = vector.broadcast %cst_18 : f32 to vector<8x128xf32>
      %c0_19 = arith.constant 0 : index
      %c0_20 = arith.constant 0 : index
      %21 = vector.load %arg10[%c0_19, %c0_20] : memref<8x128xf32, #tpu.memory_space<vmem>>, vector<8x128xf32>
      tpu.vector_store %arg10[%c0_19, %c0_20], %20 {strides = array<i32>} : memref<8x128xf32, #tpu.memory_space<vmem>>, vector<8x128xf32>,
    } else {
    }
    %c0 = arith.constant 0 : index
    %c0_1 = arith.constant 0 : index
    %3 = vector.load %arg4[%c0, %c0_1] : memref<8x128xf32, #tpu.memory_space<vmem>>, vector<8x128xf32>
    %c0_2 = arith.constant 0 : index
    %c0_3 = arith.constant 0 : index
    %4 = vector.load %arg5[%c0_2, %c0_3] : memref<128x128xf32, #tpu.memory_space<vmem>>, vector<128x128xf32>
    %c0_4 = arith.constant 0 : index
    %c0_5 = arith.constant 0 : index
    %5 = vector.load %arg9[%c0_4, %c0_5] : memref<8x128xf32, #tpu.memory_space<vmem>>, vector<8x128xf32>
    %cst = arith.constant dense<0.000000e+00> : vector<8x128xf32>
    %6 = tpu.matmul %3, %4, %cst {dimension_numbers = #tpu.dot_dimension_numbers<[1], [1], [0], [0], [0, 0, 1, 0], [], []>} : vector<8x128xf32>, vector<128x128xf32>, vector<8x128xf32> -> vector<8x128xf32>
    %7 = arith.addf %5, %6 : vector<8x128xf32>
    %c0_6 = arith.constant 0 : index
    %c0_7 = arith.constant 0 : index
    %8 = vector.load %arg9[%c0_6, %c0_7] : memref<8x128xf32, #tpu.memory_space<vmem>>, vector<8x128xf32>
    tpu.vector_store %arg9[%c0_6, %c0_7], %7 {strides = array<i32>} : memref<8x128xf32, #tpu.memory_space<vmem>>, vector<8x128xf32>,
    %c0_8 = arith.constant 0 : index
    %c0_9 = arith.constant 0 : index
    %9 = vector.load %arg10[%c0_8, %c0_9] : memref<8x128xf32, #tpu.memory_space<vmem>>, vector<8x128xf32>
    %10 = arith.mulf %3, %3 : vector<8x128xf32>
    %11 = arith.mulf %4, %4 : vector<128x128xf32>
    %cst_10 = arith.constant dense<0.000000e+00> : vector<8x128xf32>
    %12 = tpu.matmul %10, %11, %cst_10 {dimension_numbers = #tpu.dot_dimension_numbers<[1], [1], [0], [0], [0, 0, 1, 0], [], []>} : vector<8x128xf32>, vector<128x128xf32>, vector<8x128xf32> -> vector<8x128xf32>
    %13 = arith.addf %9, %12 : vector<8x128xf32>
    %c0_11 = arith.constant 0 : index
    %c0_12 = arith.constant 0 : index
    %14 = vector.load %arg10[%c0_11, %c0_12] : memref<8x128xf32, #tpu.memory_space<vmem>>, vector<8x128xf32>
    tpu.vector_store %arg10[%c0_11, %c0_12], %13 {strides = array<i32>} : memref<8x128xf32, #tpu.memory_space<vmem>>, vector<8x128xf32>,
    %c0_i32_13 = arith.constant 0 : i32
    %15 = arith.cmpi eq, %arg2, %c0_i32_13 : i32
    %16 = arith.extui %15 : i1 to i32
    %c0_i32_14 = arith.constant 0 : i32
    %17 = arith.cmpi ne, %16, %c0_i32_14 : i32
    scf.if %17 {
      %c0_15 = arith.constant 0 : index
      %18 = memref.load %arg3[%c0_15] : memref<1xf32, #tpu.memory_space<smem>>
      %c0_16 = arith.constant 0 : index
      %c0_17 = arith.constant 0 : index
      %19 = vector.load %arg6[%c0_16, %c0_17] : memref<1x128xf32, #tpu.memory_space<vmem>>, vector<1x128xf32>
      %c0_18 = arith.constant 0 : index
      %c0_19 = arith.constant 0 : index
      %20 = vector.load %arg7[%c0_18, %c0_19] : memref<8x128xf32, #tpu.memory_space<vmem>>, vector<8x128xf32>
      %21 = vector.broadcast %18 : f32 to vector<8x128xf32>
      %22 = arith.mulf %21, %20 : vector<8x128xf32>
      %c0_20 = arith.constant 0 : index
      %c0_21 = arith.constant 0 : index
      %23 = vector.load %arg10[%c0_20, %c0_21] : memref<8x128xf32, #tpu.memory_space<vmem>>, vector<8x128xf32>
      %24 = math.sqrt %23 : vector<8x128xf32>
      %25 = arith.mulf %22, %24 : vector<8x128xf32>
      %c0_22 = arith.constant 0 : index
      %c0_23 = arith.constant 0 : index
      %26 = vector.load %arg9[%c0_22, %c0_23] : memref<8x128xf32, #tpu.memory_space<vmem>>, vector<8x128xf32>
      %27 = vector.broadcast %19 : vector<1x128xf32> to vector<8x128xf32>
      %28 = arith.addf %26, %27 : vector<8x128xf32>
      %29 = arith.addf %28, %25 : vector<8x128xf32>
      %c0_24 = arith.constant 0 : index
      %c0_25 = arith.constant 0 : index
      %30 = vector.load %arg8[%c0_24, %c0_25] : memref<8x128xf32, #tpu.memory_space<vmem>>, vector<8x128xf32>
      tpu.vector_store %arg8[%c0_24, %c0_25], %29 {strides = array<i32>} : memref<8x128xf32, #tpu.memory_space<vmem>>, vector<8x128xf32>,
    } else {
    }
    return
  }
  func.func @transform_0(%arg0: i32, %arg1: i32, %arg2: i32) -> i32 {
    %c0_i32 = arith.constant 0 : i32
    %c0_i32_0 = arith.constant 0 : i32
    return %c0_i32 : i32
  }
  func.func @transform_1(%arg0: i32, %arg1: i32, %arg2: i32) -> (i32, i32) {
    %c0_i32 = arith.constant 0 : i32
    return %arg0, %arg2 : i32, i32
  }
  func.func @transform_2(%arg0: i32, %arg1: i32, %arg2: i32) -> (i32, i32) {
    %c0_i32 = arith.constant 0 : i32
    return %arg1, %arg2 : i32, i32
  }
  func.func @transform_3(%arg0: i32, %arg1: i32, %arg2: i32) -> (i32, i32) {
    %c0_i32 = arith.constant 0 : i32
    %c0_i32_0 = arith.constant 0 : i32
    return %c0_i32, %arg1 : i32, i32
  }
  func.func @transform_4(%arg0: i32, %arg1: i32, %arg2: i32) -> (i32, i32) {
    %c0_i32 = arith.constant 0 : i32
    return %arg0, %arg1 : i32, i32
  }
  func.func @transform_5(%arg0: i32, %arg1: i32, %arg2: i32) -> (i32, i32) {
    %c0_i32 = arith.constant 0 : i32
    return %arg0, %arg1 : i32, i32
  }
}

</mosaic_0001>

<llo_original>
// kernel: tpu_custom_call.1
$region0: #{tpu_custom_call.1}
  #allocation0 [shape = 'u32[]', space=smem, size = 0x4, offset = 0x4, fixed_abs, tag = 'smem constant byte address 0x4 - core index']
  #allocation1 [shape = 'u32[144,128]{1,0:T(1,128)}', space=vmem, size = 0x12000, scoped, tag = 'internal scratch']
  #allocation2 [shape = 'f32[8,128]{1,0:T(8,128)}', space=vmem, size = 0x1000, scoped, tag = 'scratch operand']
  #allocation3 [shape = 'f32[8,128]{1,0:T(8,128)}', space=vmem, size = 0x1000, scoped, tag = 'scratch operand']
  #allocation4 [shape = 'f32[1]{0:T(128)S(6)}', space=smem, size = 0x200, scoped, tag = 'scoped memory for tpu_custom_call.1']
  %s0 = inlined_call_operand.<no memory space> [shape: f32[1], index: 0, kind: input, shape index: {}]
  %s1 = inlined_call_operand.hbm [shape: f32[8,128], index: 1, kind: input, shape index: {}]
  %s2 = inlined_call_operand.hbm [shape: f32[128,128], index: 2, kind: input, shape index: {}]
  %s3 = inlined_call_operand.vmem [shape: f32[1,128], index: 3, kind: input, shape index: {}]
  %s4 = inlined_call_operand.hbm [shape: f32[8,128], index: 4, kind: input, shape index: {}]
  %s5 = inlined_call_operand.hbm [shape: f32[8,128], index: 5, kind: output, shape index: {}]
  %s6 = sld [smem:[#allocation0]]
  $region50: #{tpu_custom_call.1} parent=0
    _
  %s8 = ssub.s32 1, %s6
  %s9 = scalar_select 0, %s8, %s6
  %10 = sst [smem:[#allocation4]] %s0
  $region1: #{tpu_custom_call.1} parent=0
    #allocation5 [shape = 'u8[4096]{0}', space=vmem, size = 0x1000, scoped, tag = 'input window, operand 1, single buffered']
    #allocation6 [shape = 's32[1]{0}', space=sflag, size = 0x4, scoped, tag = 'scoped memory for tpu_custom_call.1']
    #allocation7 [shape = 's32[1]{0}', space=sflag, size = 0x4, scoped, tag = 'scoped memory for tpu_custom_call.1']
    #allocation8 [shape = 'u8[65536]{0}', space=vmem, size = 0x10000, scoped, tag = 'input window, operand 2, single buffered']
    #allocation9 [shape = 's32[1]{0}', space=sflag, size = 0x4, scoped, tag = 'scoped memory for tpu_custom_call.1']
    #allocation10 [shape = 'u8[4096]{0}', space=vmem, size = 0x1000, scoped, tag = 'input window, operand 4, single buffered']
    #allocation11 [shape = 'u8[4096]{0}', space=vmem, size = 0x1000, scoped, tag = 'output window, operand 0, single buffered']
    %11 = vsyncpa [#allocation6], 0
    %12 = vsyncpa [#allocation9], 0
    %13 = vsyncpa [#allocation7], 0
    // Predicated region
    $region2: #{tpu_custom_call.1} parent=1 // pred_check
      _
    $region3: #{tpu_custom_call.1} parent=1 // pred_check_branch
      %15 = sbr.rel (0) target = $region5
    $region4: #{tpu_custom_call.1} parent=1 // pred_region
      _
    $region5: #{tpu_custom_call.1} parent=1 // pred_fallthru
      _
    // Predicated region
    $region6: #{tpu_custom_call.1} parent=1 // pred_check
      _
    $region7: #{tpu_custom_call.1} parent=1 // pred_check_branch
      %17 = sbr.rel (0) target = $region9
    $region8: #{tpu_custom_call.1} parent=1 // pred_region
      %s19 = ssub.s32 128, 128
      %20 = vsyncadd [#allocation6], %s19
      %s22 = sshll.u32 [#allocation5], 4
      %s23 = int_to_ptr.vmem [resolvable:$true] %s22
      %25 = dma.hbm_to_vmem [thread:$0]  %s1, 128, %s23, [#allocation6]
    $region9: #{tpu_custom_call.1} parent=1 // pred_fallthru
      _
    // Predicated region
    $region10: #{tpu_custom_call.1} parent=1 // pred_check
      _
    $region11: #{tpu_custom_call.1} parent=1 // pred_check_branch
      %27 = sbr.rel (0) target = $region13
    $region12: #{tpu_custom_call.1} parent=1 // pred_region
      %s29 = ssub.s32 2048, 2048
      %30 = vsyncadd [#allocation9], %s29
      %s31 = sshll.u32 [#allocation8], 4
      %s32 = int_to_ptr.vmem [resolvable:$true] %s31
      %37 = dma.hbm_to_vmem [thread:$0]  %s2, 2048, %s32, [#allocation9], 128, 128, 8
    $region13: #{tpu_custom_call.1} parent=1 // pred_fallthru
      _
    // Predicated region
    $region14: #{tpu_custom_call.1} parent=1 // pred_check
      _
    $region15: #{tpu_custom_call.1} parent=1 // pred_check_branch
      %39 = sbr.rel (0) target = $region17
    $region16: #{tpu_custom_call.1} parent=1 // pred_region
      _
    $region17: #{tpu_custom_call.1} parent=1 // pred_fallthru
      _
    // Predicated region
    $region18: #{tpu_custom_call.1} parent=1 // pred_check
      _
    $region19: #{tpu_custom_call.1} parent=1 // pred_check_branch
      %41 = sbr.rel (0) target = $region21
    $region20: #{tpu_custom_call.1} parent=1 // pred_region
      %s43 = ssub.s32 128, 128
      %44 = vsyncadd [#allocation9], %s43
      %s46 = sshll.u32 [#allocation10], 4
      %s47 = int_to_ptr.vmem [resolvable:$true] %s46
      %49 = dma.hbm_to_vmem [thread:$0]  %s4, 128, %s47, [#allocation9]
    $region21: #{tpu_custom_call.1} parent=1 // pred_fallthru
      _
    // Predicated region
    $region22: #{tpu_custom_call.1} parent=1 // pred_check
      _
    $region23: #{tpu_custom_call.1} parent=1 // pred_check_branch
      %51 = sbr.rel (0) target = $region25
    $region24: #{tpu_custom_call.1} parent=1 // pred_region
      %52 = dma.done [#allocation6], 128
    $region25: #{tpu_custom_call.1} parent=1 // pred_fallthru
      _
    // Predicated region
    $region26: #{tpu_custom_call.1} parent=1 // pred_check
      _
    $region27: #{tpu_custom_call.1} parent=1 // pred_check_branch
      %54 = sbr.rel (0) target = $region29
    $region28: #{tpu_custom_call.1} parent=1 // pred_region
      %55 = dma.done [#allocation9], 2048
    $region29: #{tpu_custom_call.1} parent=1 // pred_fallthru
      _
    // Predicated region
    $region30: #{tpu_custom_call.1} parent=1 // pred_check
      _
    $region31: #{tpu_custom_call.1} parent=1 // pred_check_branch
      %57 = sbr.rel (0) target = $region33
    $region32: #{tpu_custom_call.1} parent=1 // pred_region
      %58 = dma.done [#allocation9], 128
    $region33: #{tpu_custom_call.1} parent=1 // pred_fallthru
      _
    %p59 = scmp.eq.s32.totalorder 0, 0
    // Predicated region
    $region34: #{tpu_custom_call.1} parent=1 // pred_check
      %p60 = pneg %p59
    $region35: #{tpu_custom_call.1} parent=1 // pred_check_branch
      %62 = sbr.rel (%p60) target = $region37
    $region36: #{tpu_custom_call.1} parent=1 // pred_region
      %63 = vst [vmem:[#allocation2] sm:$0xff] 0.0
      %64 = vst [vmem:[#allocation3] sm:$0xff] 0.0
    $region37: #{tpu_custom_call.1} parent=1 // pred_fallthru
      _
    %v65 = vld [vmem:[#allocation5] sm:$0xff]
    %v66 = vld [vmem:[#allocation8] sm:$0xff]
    %v67 = vld [vmem:[#allocation8 + $0x8] sm:$0xff]
    %v68 = vld [vmem:[#allocation8 + $0x10] sm:$0xff]
    %v69 = vld [vmem:[#allocation8 + $0x18] sm:$0xff]
    %v70 = vld [vmem:[#allocation8 + $0x20] sm:$0xff]
    %v71 = vld [vmem:[#allocation8 + $0x28] sm:$0xff]
    %v72 = vld [vmem:[#allocation8 + $0x30] sm:$0xff]
    %v73 = vld [vmem:[#allocation8 + $0x38] sm:$0xff]
    %v74 = vld [vmem:[#allocation8 + $0x40] sm:$0xff]
    %v75 = vld [vmem:[#allocation8 + $0x48] sm:$0xff]
    %v76 = vld [vmem:[#allocation8 + $0x50] sm:$0xff]
    %v77 = vld [vmem:[#allocation8 + $0x58] sm:$0xff]
    %v78 = vld [vmem:[#allocation8 + $0x60] sm:$0xff]
    %v79 = vld [vmem:[#allocation8 + $0x68] sm:$0xff]
    %v80 = vld [vmem:[#allocation8 + $0x70] sm:$0xff]
    %v81 = vld [vmem:[#allocation8 + $0x78] sm:$0xff]
    %v82 = vld [vmem:[#allocation2] sm:$0xff]
    %83 = vmatprep.subr.mxu0 0.0
    %84 = vmatpush1.xpose.msra.mxu0 %v81
    %85 = vmatprep.subr.mxu0 0.0
    %86 = vmatpush1.xpose.msra.mxu0 %v80
    %87 = vmatprep.subr.mxu0 0.0
    %88 = vmatpush1.xpose.msra.mxu0 %v79
    %89 = vmatprep.subr.mxu0 0.0
    %90 = vmatpush1.xpose.msra.mxu0 %v78
    %91 = vmatprep.subr.mxu0 0.0
    %92 = vmatpush1.xpose.msra.mxu0 %v77
    %93 = vmatprep.subr.mxu0 0.0
    %94 = vmatpush1.xpose.msra.mxu0 %v76
    %95 = vmatprep.subr.mxu0 0.0
    %96 = vmatpush1.xpose.msra.mxu0 %v75
    %97 = vmatprep.subr.mxu0 0.0
    %98 = vmatpush1.xpose.msra.mxu0 %v74
    %99 = vmatprep.subr.mxu0 0.0
    %100 = vmatpush1.xpose.msra.mxu0 %v73
    %101 = vmatprep.subr.mxu0 0.0
    %102 = vmatpush1.xpose.msra.mxu0 %v72
    %103 = vmatprep.subr.mxu0 0.0
    %104 = vmatpush1.xpose.msra.mxu0 %v71
    %105 = vmatprep.subr.mxu0 0.0
    %106 = vmatpush1.xpose.msra.mxu0 %v70
    %107 = vmatprep.subr.mxu0 0.0
    %108 = vmatpush1.xpose.msra.mxu0 %v69
    %109 = vmatprep.subr.mxu0 0.0
    %110 = vmatpush1.xpose.msra.mxu0 %v68
    %111 = vmatprep.subr.mxu0 0.0
    %112 = vmatpush1.xpose.msra.mxu0 %v67
    %113 = vmatprep.subr.mxu0 0.0
    %114 = vmatpush1.xpose.msra.mxu0 %v66
    %115 = vmatprep.subr.mxu0 0.0
    %116 = vmatpush2.xpose.msra.mxu0 0.0
    %117 = vmatprep.subr.mxu0 0.0
    %118 = vmatpush2.xpose.msra.mxu0 0.0
    %119 = vmatprep.subr.mxu0 0.0
    %120 = vmatpush2.xpose.msra.mxu0 0.0
    %121 = vmatprep.subr.mxu0 0.0
    %122 = vmatpush2.xpose.msra.mxu0 0.0
    %123 = vmatprep.subr.mxu0 0.0
    %124 = vmatpush2.xpose.msra.mxu0 0.0
    %125 = vmatprep.subr.mxu0 0.0
    %126 = vmatpush2.xpose.msra.mxu0 0.0
    %127 = vmatprep.subr.mxu0 0.0
    %128 = vmatpush2.xpose.msra.mxu0 0.0
    %129 = vmatprep.subr.mxu0 0.0
    %130 = vmatpush2.xpose.msra.mxu0 0.0
    %131 = vmatprep.subr.mxu0 0.0
    %132 = vmatpush2.xpose.msra.mxu0 0.0
    %133 = vmatprep.subr.mxu0 0.0
    %134 = vmatpush2.xpose.msra.mxu0 0.0
    %135 = vmatprep.subr.mxu0 0.0
    %136 = vmatpush2.xpose.msra.mxu0 0.0
    %137 = vmatprep.subr.mxu0 0.0
    %138 = vmatpush2.xpose.msra.mxu0 0.0
    %139 = vmatprep.subr.mxu0 0.0
    %140 = vmatpush2.xpose.msra.mxu0 0.0
    %141 = vmatprep.subr.mxu0 0.0
    %142 = vmatpush2.xpose.msra.mxu0 0.0
    %143 = vmatprep.subr.mxu0 0.0
    %144 = vmatpush2.xpose.msra.mxu0 0.0
    %145 = vmatprep.subr.mxu0 0.0
    %146 = vmatpush2.xpose.msra.mxu0 0.0
    %147 = vmatprep.mubr.f32.mxu0 0.0
    %148 = vmatmul.mubr.f32.gmra.mxu0 %v65
    %v149 = vpop.f32.mrf.mxu0
    %v150 = vadd.f32 0.0, %v149
    %v151 = vpop.f32.mrf.mxu0
    %152 = vdwg.mxu0
    %v153 = vadd.f32 %v82, %v150
    %154 = vst [vmem:[#allocation2] sm:$0xff] %v153
    %v155 = vld [vmem:[#allocation3] sm:$0xff]
    %v156 = vmul.f32 %v65, %v65
    %v157 = vmul.f32 %v66, %v66
    %v158 = vmul.f32 %v67, %v67
    %v159 = vmul.f32 %v68, %v68
    %v160 = vmul.f32 %v69, %v69
    %v161 = vmul.f32 %v70, %v70
    %v162 = vmul.f32 %v71, %v71
    %v163 = vmul.f32 %v72, %v72
    %v164 = vmul.f32 %v73, %v73
    %v165 = vmul.f32 %v74, %v74
    %v166 = vmul.f32 %v75, %v75
    %v167 = vmul.f32 %v76, %v76
    %v168 = vmul.f32 %v77, %v77
    %v169 = vmul.f32 %v78, %v78
    %v170 = vmul.f32 %v79, %v79
    %v171 = vmul.f32 %v80, %v80
    %v172 = vmul.f32 %v81, %v81
    %173 = vmatprep.subr.mxu0 0.0
    %174 = vmatpush1.xpose.msra.mxu0 %v172
    %175 = vmatprep.subr.mxu0 0.0
    %176 = vmatpush1.xpose.msra.mxu0 %v171
    %177 = vmatprep.subr.mxu0 0.0
    %178 = vmatpush1.xpose.msra.mxu0 %v170
    %179 = vmatprep.subr.mxu0 0.0
    %180 = vmatpush1.xpose.msra.mxu0 %v169
    %181 = vmatprep.subr.mxu0 0.0
    %182 = vmatpush1.xpose.msra.mxu0 %v168
    %183 = vmatprep.subr.mxu0 0.0
    %184 = vmatpush1.xpose.msra.mxu0 %v167
    %185 = vmatprep.subr.mxu0 0.0
    %186 = vmatpush1.xpose.msra.mxu0 %v166
    %187 = vmatprep.subr.mxu0 0.0
    %188 = vmatpush1.xpose.msra.mxu0 %v165
    %189 = vmatprep.subr.mxu0 0.0
    %190 = vmatpush1.xpose.msra.mxu0 %v164
    %191 = vmatprep.subr.mxu0 0.0
    %192 = vmatpush1.xpose.msra.mxu0 %v163
    %193 = vmatprep.subr.mxu0 0.0
    %194 = vmatpush1.xpose.msra.mxu0 %v162
    %195 = vmatprep.subr.mxu0 0.0
    %196 = vmatpush1.xpose.msra.mxu0 %v161
    %197 = vmatprep.subr.mxu0 0.0
    %198 = vmatpush1.xpose.msra.mxu0 %v160
    %199 = vmatprep.subr.mxu0 0.0
    %200 = vmatpush1.xpose.msra.mxu0 %v159
    %201 = vmatprep.subr.mxu0 0.0
    %202 = vmatpush1.xpose.msra.mxu0 %v158
    %203 = vmatprep.subr.mxu0 0.0
    %204 = vmatpush1.xpose.msra.mxu0 %v157
    %205 = vmatprep.subr.mxu0 0.0
    %206 = vmatpush2.xpose.msra.mxu0 0.0
    %207 = vmatprep.subr.mxu0 0.0
    %208 = vmatpush2.xpose.msra.mxu0 0.0
    %209 = vmatprep.subr.mxu0 0.0
    %210 = vmatpush2.xpose.msra.mxu0 0.0
    %211 = vmatprep.subr.mxu0 0.0
    %212 = vmatpush2.xpose.msra.mxu0 0.0
    %213 = vmatprep.subr.mxu0 0.0
    %214 = vmatpush2.xpose.msra.mxu0 0.0
    %215 = vmatprep.subr.mxu0 0.0
    %216 = vmatpush2.xpose.msra.mxu0 0.0
    %217 = vmatprep.subr.mxu0 0.0
    %218 = vmatpush2.xpose.msra.mxu0 0.0
    %219 = vmatprep.subr.mxu0 0.0
    %220 = vmatpush2.xpose.msra.mxu0 0.0
    %221 = vmatprep.subr.mxu0 0.0
    %222 = vmatpush2.xpose.msra.mxu0 0.0
    %223 = vmatprep.subr.mxu0 0.0
    %224 = vmatpush2.xpose.msra.mxu0 0.0
    %225 = vmatprep.subr.mxu0 0.0
    %226 = vmatpush2.xpose.msra.mxu0 0.0
    %227 = vmatprep.subr.mxu0 0.0
    %228 = vmatpush2.xpose.msra.mxu0 0.0
    %229 = vmatprep.subr.mxu0 0.0
    %230 = vmatpush2.xpose.msra.mxu0 0.0
    %231 = vmatprep.subr.mxu0 0.0
    %232 = vmatpush2.xpose.msra.mxu0 0.0
    %233 = vmatprep.subr.mxu0 0.0
    %234 = vmatpush2.xpose.msra.mxu0 0.0
    %235 = vmatprep.subr.mxu0 0.0
    %236 = vmatpush2.xpose.msra.mxu0 0.0
    %237 = vmatprep.mubr.f32.mxu0 0.0
    %238 = vmatmul.mubr.f32.gmra.mxu0 %v156
    %v239 = vpop.f32.mrf.mxu0
    %v240 = vadd.f32 0.0, %v239
    %v241 = vpop.f32.mrf.mxu0
    %242 = vdwg.mxu0
    %v243 = vadd.f32 %v155, %v240
    %244 = vst [vmem:[#allocation3] sm:$0xff] %v243
    // Predicated region
    $region38: #{tpu_custom_call.1} parent=1 // pred_check
      %p245 = pneg %p59
    $region39: #{tpu_custom_call.1} parent=1 // pred_check_branch
      %247 = sbr.rel (%p245) target = $region41
    $region40: #{tpu_custom_call.1} parent=1 // pred_region
      %s248 = sld [smem:[#allocation4]]
      %v249 = vld [vmem:[%s3] sm:$0x1]
      %v250 = vld [vmem:[#allocation10] sm:$0xff]
      %v251 = vstv %s248
      %v252 = vmul.f32 %v251, %v250
      %v253 = vld [vmem:[#allocation3] sm:$0xff]
      %v254 = vrsqrt.pop %v253
      %v255 = vmul.f32 %v253, %v254
      %vm256 = vcmp.eq.f32.partialorder %v253, inf
      %v257 = vsel %vm256, %v253, %v255
      %vm258 = vcmp.eq.f32.partialorder %v253, 0.0
      %v259 = vand.u32 %v253, 2147483648
      %v260 = vsel %vm258, %v259, %v257
      %v261 = vmul.f32 %v252, %v260
      %v262 = vld [vmem:[#allocation2] sm:$0xff]
      %v264 = vlaneseq
      %v265 = vshrl.u32 %v264, 7
      %v266 = vsub.s32 0, %v265
      %v267 = vrot.slane %v249, %v266
      %v269 = vadd.f32 %v262, %v267
      %v270 = vadd.f32 %v269, %v261
      %271 = vst [vmem:[#allocation11] sm:$0xff] %v270
    $region41: #{tpu_custom_call.1} parent=1 // pred_fallthru
      _
    // Predicated region
    $region42: #{tpu_custom_call.1} parent=1 // pred_check
      _
    $region43: #{tpu_custom_call.1} parent=1 // pred_check_branch
      %273 = sbr.rel (0) target = $region45
    $region44: #{tpu_custom_call.1} parent=1 // pred_region
      %s275 = ssub.s32 128, 128
      %276 = vsyncadd [#allocation7], %s275
      %s278 = sshll.u32 [#allocation11], 4
      %s279 = int_to_ptr.vmem [resolvable:$true] %s278
      %281 = dma.vmem_to_hbm [thread:$0]  %s279, 128, %s5, [#allocation7]
    $region45: #{tpu_custom_call.1} parent=1 // pred_fallthru
      _
    // Predicated region
    $region46: #{tpu_custom_call.1} parent=1 // pred_check
      _
    $region47: #{tpu_custom_call.1} parent=1 // pred_check_branch
      %283 = sbr.rel (0) target = $region49
    $region48: #{tpu_custom_call.1} parent=1 // pred_region
      %284 = dma.done [#allocation7], 128
    $region49: #{tpu_custom_call.1} parent=1 // pred_fallthru
      _
    %285 = vsyncpa [#allocation6], 1
    %286 = vsyncpa [#allocation9], 1
    %287 = vsyncpa [#allocation7], 1

</llo_original>
